<compile_context>
chip_gen: v5e
topology: v5e:2x2
jax: 0.10.0
libtpu: 0.0.40
codegen_flags: <defaults>
</compile_context>

<pallas_src>
import functools

import jax
import jax.numpy as jnp
from jax.experimental import pallas as pl
from jax.experimental.pallas import tpu as pltpu

_LANES = 128


def _round_up(x, m):
    return (x + m - 1) // m * m


def _share_encoder_kernel(x_ref, w1_ref, b1_ref, w2_ref, b2_ref,
                          w3_ref, b3_ref, w4_ref, b4_ref,
                          o_ref, acc_ref, *, seq_len, ts, n_s):
    """One (batch b, seq-tile s) grid step: 3-layer MLP + partial sum of h3.

    The final Linear (layer 4) commutes with the mean-pool, so it is applied
    once per batch element in the finalize branch instead of per tile.
    """
    s = pl.program_id(1)
    last = n_s - 1

    @pl.when(s == 0)
    def _():
        acc_ref[...] = jnp.zeros_like(acc_ref)

    x = x_ref[0]  # (ts, Din)

    # Linear -> ReLU (x3); layer 1 is lane-padded to 128 so everything is
    # lane-dense.  All matmuls on the MXU with f32 accumulation.
    h = jnp.dot(x, w1_ref[...], preferred_element_type=jnp.float32) + b1_ref[...]
    h = jnp.maximum(h, 0.0)
    h = jnp.dot(h, w2_ref[...], preferred_element_type=jnp.float32) + b2_ref[...]
    h = jnp.maximum(h, 0.0)
    h = jnp.dot(h, w3_ref[...], preferred_element_type=jnp.float32) + b3_ref[...]
    h3 = jnp.maximum(h, 0.0)  # (ts, 256)

    # Accumulate the per-batch sequence sum of h3.  The row mask for a
    # partial last tile is only emitted when S % ts != 0 (static), and then
    # only runs on the last tile.
    if seq_len % ts == 0:
        acc_ref[...] += jnp.sum(h3, axis=0, keepdims=True)
    else:
        @pl.when(s != last)
        def _():
            acc_ref[...] += jnp.sum(h3, axis=0, keepdims=True)

        @pl.when(s == last)
        def _():
            row = s * ts + jax.lax.broadcasted_iota(jnp.int32, h3.shape, 0)
            acc_ref[...] += jnp.sum(jnp.where(row < seq_len, h3, 0.0),
                                    axis=0, keepdims=True)

    @pl.when(s == last)
    def _():
        pooled = acc_ref[...] * (1.0 / seq_len)          # (1, 256)
        y = jnp.dot(pooled, w4_ref[...],
                    preferred_element_type=jnp.float32) + b4_ref[...]
        o_ref[0] = y.astype(o_ref.dtype)


def _pick_ts(seq_len, max_rows_per_step):
    """Row-tile size: full sequence if it fits, else a multiple of 128."""
    if seq_len <= max_rows_per_step:
        return seq_len  # block dim equals full array dim -> always legal
    if max_rows_per_step >= 128:
        return (max_rows_per_step // 128) * 128  # MXU-granular M tile
    return max(8, (max_rows_per_step // 8) * 8)


def _resident(shape):
    """BlockSpec for a VMEM-resident (constant-index) weight/bias."""
    return pl.BlockSpec(shape, lambda b, s: (0, 0))


def share_encoder(x, params, *, max_rows_per_step=1024):
    """Forward of share_Encoder.

    x:      [B, S, input_dim] float32
    params: dict with w1..w4 stored as [in, out] (PyTorch weight.T) and
            b1..b4 as [out].
    Returns [B, output_dim] (mean over S of the per-token MLP output).
    """
    B, S, Din = x.shape
    w1, b1 = params["w1"], params["b1"]
    w2, b2 = params["w2"], params["b2"]
    w3, b3 = params["w3"], params["b3"]
    w4, b4 = params["w4"], params["b4"]
    h1, h2, h3 = w1.shape[1], w2.shape[1], w3.shape[1]
    Dout = w4.shape[1]

    # Lane-dense hidden layer 1 (64 -> 128 lanes): zero-pad w1's output
    # columns / b1, and w2's input rows.  Zero columns are ReLU-invariant,
    # so the result is bit-identical.
    h1p = _round_up(h1, _LANES)
    w1p = jnp.zeros((Din, h1p), w1.dtype).at[:, :h1].set(w1)
    b1p = jnp.zeros((h1p,), b1.dtype).at[:h1].set(b1)
    w2p = jnp.zeros((h1p, h2), w2.dtype).at[:h1, :].set(w2)

    # Lane-dense output: pad the final (hoisted) layer to 128 lanes.
    Dout_pad = _round_up(Dout, _LANES)
    w4p = jnp.zeros((h3, Dout_pad), w4.dtype).at[:, :Dout].set(w4)
    b4p = jnp.zeros((Dout_pad,), b4.dtype).at[:Dout].set(b4)

    b1r = b1p.reshape(1, h1p)
    b2r = b2.reshape(1, h2)
    b3r = b3.reshape(1, h3)
    b4r = b4p.reshape(1, Dout_pad)

    ts = _pick_ts(S, max_rows_per_step)
    n_s = pl.cdiv(S, ts)

    weight_bytes = 4 * (Din * h1p + h1p + h1p * h2 + h2 + h2 * h3 + h3
                        + h3 * Dout_pad + Dout_pad)
    cost = pl.CostEstimate(
        flops=2 * B * S * (Din * h1p + h1p * h2 + h2 * h3)
        + 2 * B * h3 * Dout_pad,
        transcendentals=0,
        bytes_accessed=4 * B * S * Din + weight_bytes + 4 * B * Dout_pad,
    )

    out = pl.pallas_call(
        functools.partial(_share_encoder_kernel, seq_len=S, ts=ts, n_s=n_s),
        out_shape=jax.ShapeDtypeStruct((B, 1, Dout_pad), x.dtype),
        grid_spec=pltpu.PrefetchScalarGridSpec(
            num_scalar_prefetch=0,
            grid=(B, n_s),
            in_specs=[
                # x row tiles: pipelined along the (reduction) sequence axis.
                pl.BlockSpec((1, ts, Din), lambda b, s: (b, s, 0)),
                # Weights/biases: constant index maps -> resident in VMEM.
                _resident((Din, h1p)),
                _resident((1, h1p)),
                _resident((h1p, h2)),
                _resident((1, h2)),
                _resident((h2, h3)),
                _resident((1, h3)),
                _resident((h3, Dout_pad)),
                _resident((1, Dout_pad)),
            ],
            # Output block is revisited across the pooling axis (accumulator).
            out_specs=pl.BlockSpec((1, 1, Dout_pad), lambda b, s: (b, 0, 0)),
            scratch_shapes=[pltpu.VMEM((1, h3), jnp.float32)],
        ),
        compiler_params=pltpu.CompilerParams(
            dimension_semantics=("parallel", "arbitrary"),
        ),
        cost_estimate=cost,
    )(x, w1p, b1r, w2p, b2r, w3, b3r, w4p, b4r)

    return out[:, 0, :Dout]


if __name__ == "__main__":
    # Shapes consistent with share_Encoder defaults:
    # input_dim=256 (fixed by the MLP), output_dim=2, batch=4, seq=32.
    B, S = 4, 32
    input_dim, output_dim = 256, 2
    dims = [input_dim, 64, 128, 256, output_dim]

    key = jax.random.PRNGKey(0)
    keys = jax.random.split(key, 10)

    params = {}
    for i in range(4):
        fan_in = dims[i]
        bound = 1.0 / (fan_in ** 0.5)
        params[f"w{i + 1}"] = jax.random.uniform(
            keys[2 * i], (dims[i], dims[i + 1]), jnp.float32,
            minval=-bound, maxval=bound)
        params[f"b{i + 1}"] = jax.random.uniform(
            keys[2 * i + 1], (dims[i + 1],), jnp.float32,
            minval=-bound, maxval=bound)

    def ref_forward(xx):
        h = xx
        for i in range(1, 4):
            h = jnp.maximum(h @ params[f"w{i}"] + params[f"b{i}"], 0.0)
        h = h @ params["w4"] + params["b4"]
        return jnp.mean(h, axis=1)

    # Primary case (module-default shapes): whole sequence in one tile,
    # grid = (B, 1) with a parallel batch axis.
    x = jax.random.normal(keys[8], (B, S, input_dim), jnp.float32)
    out = jax.block_until_ready(share_encoder(x, params))
    assert out.shape == (B, output_dim)
    assert jnp.allclose(out, ref_forward(x), atol=1e-4, rtol=1e-4)

    # Secondary case: multi-tile pooling axis with a partial last tile
    # (exercises the f32 accumulator and the compile-time-gated row mask).
    x2 = jax.random.normal(keys[9], (2, 200, input_dim), jnp.float32)
    out2 = jax.block_until_ready(
        share_encoder(x2, params, max_rows_per_step=128))
    assert jnp.allclose(out2, ref_forward(x2), atol=1e-4, rtol=1e-4)

    print("KERNEL_OK")
</pallas_src>

<mosaic_0001>
module attributes {stable_mosaic.version = 11 : i64} {
  func.func @_share_encoder_kernel(%arg0: i32, %arg1: i32, %arg2: memref<1x32x256xf32, #tpu.memory_space<vmem>>, %arg3: memref<256x128xf32, #tpu.memory_space<vmem>>, %arg4: memref<1x128xf32, #tpu.memory_space<vmem>>, %arg5: memref<128x128xf32, #tpu.memory_space<vmem>>, %arg6: memref<1x128xf32, #tpu.memory_space<vmem>>, %arg7: memref<128x256xf32, #tpu.memory_space<vmem>>, %arg8: memref<1x256xf32, #tpu.memory_space<vmem>>, %arg9: memref<256x128xf32, #tpu.memory_space<vmem>>, %arg10: memref<1x128xf32, #tpu.memory_space<vmem>>, %arg11: memref<1x1x128xf32, #tpu.memory_space<vmem>>, %arg12: memref<1x256xf32, #tpu.memory_space<vmem>>) attributes {dimension_semantics = [#tpu.dimension_semantics<parallel>, #tpu.dimension_semantics<arbitrary>], iteration_bounds = array<i64: 4, 1>, scalar_prefetch = 0 : i64, scratch_operands = 1 : i64, tpu.core_type = #tpu.core_type<tc>, window_params = [{transform_indices = @transform_0, window_bounds = array<i64: 1, 32, 256>}, {pipeline_mode = #tpu.pipeline_mode<synchronous>, transform_indices = @transform_1, window_bounds = array<i64: 256, 128>}, {pipeline_mode = #tpu.pipeline_mode<synchronous>, transform_indices = @transform_2, window_bounds = array<i64: 1, 128>}, {pipeline_mode = #tpu.pipeline_mode<synchronous>, transform_indices = @transform_3, window_bounds = array<i64: 128, 128>}, {pipeline_mode = #tpu.pipeline_mode<synchronous>, transform_indices = @transform_4, window_bounds = array<i64: 1, 128>}, {pipeline_mode = #tpu.pipeline_mode<synchronous>, transform_indices = @transform_5, window_bounds = array<i64: 128, 256>}, {pipeline_mode = #tpu.pipeline_mode<synchronous>, transform_indices = @transform_6, window_bounds = array<i64: 1, 256>}, {pipeline_mode = #tpu.pipeline_mode<synchronous>, transform_indices = @transform_7, window_bounds = array<i64: 256, 128>}, {pipeline_mode = #tpu.pipeline_mode<synchronous>, transform_indices = @transform_8, window_bounds = array<i64: 1, 128>}, {transform_indices = @transform_9, window_bounds = array<i64: 1, 1, 128>}]} {
    %c0_i32 = arith.constant 0 : i32
    %0 = arith.cmpi eq, %arg1, %c0_i32 : i32
    %1 = arith.extui %0 : i1 to i32
    %c0_i32_0 = arith.constant 0 : i32
    %2 = arith.cmpi ne, %1, %c0_i32_0 : i32
    scf.if %2 {
      %cst_27 = arith.constant 0.000000e+00 : f32
      %34 = vector.broadcast %cst_27 : f32 to vector<1x256xf32>
      %c0_28 = arith.constant 0 : index
      %c0_29 = arith.constant 0 : index
      %35 = vector.load %arg12[%c0_28, %c0_29] : memref<1x256xf32, #tpu.memory_space<vmem>>, vector<1x256xf32>
      tpu.vector_store %arg12[%c0_28, %c0_29], %34 {strides = array<i32>} : memref<1x256xf32, #tpu.memory_space<vmem>>, vector<1x256xf32>,
    } else {
    }
    %c0 = arith.constant 0 : index
    %c0_1 = arith.constant 0 : index
    %c0_2 = arith.constant 0 : index
    %3 = vector.load %arg2[%c0, %c0_1, %c0_2] : memref<1x32x256xf32, #tpu.memory_space<vmem>>, vector<1x32x256xf32>
    %4 = vector.shape_cast %3 : vector<1x32x256xf32> to vector<32x256xf32>
    %c0_3 = arith.constant 0 : index
    %c0_4 = arith.constant 0 : index
    %5 = vector.load %arg3[%c0_3, %c0_4] : memref<256x128xf32, #tpu.memory_space<vmem>>, vector<256x128xf32>
    %cst = arith.constant dense<0.000000e+00> : vector<32x128xf32>
    %6 = tpu.matmul %4, %5, %cst {dimension_numbers = #tpu.dot_dimension_numbers<[1], [0], [0], [1], [0, 0, 1, 1], [], []>} : vector<32x256xf32>, vector<256x128xf32>, vector<32x128xf32> -> vector<32x128xf32>
    %c0_5 = arith.constant 0 : index
    %c0_6 = arith.constant 0 : index
    %7 = vector.load %arg4[%c0_5, %c0_6] : memref<1x128xf32, #tpu.memory_space<vmem>>, vector<1x128xf32>
    %8 = vector.broadcast %7 : vector<1x128xf32> to vector<32x128xf32>
    %9 = arith.addf %6, %8 : vector<32x128xf32>
    %cst_7 = arith.constant 0.000000e+00 : f32
    %10 = vector.broadcast %cst_7 : f32 to vector<32x128xf32>
    %11 = arith.maximumf %9, %10 : vector<32x128xf32>
    %c0_8 = arith.constant 0 : index
    %c0_9 = arith.constant 0 : index
    %12 = vector.load %arg5[%c0_8, %c0_9] : memref<128x128xf32, #tpu.memory_space<vmem>>, vector<128x128xf32>
    %cst_10 = arith.constant dense<0.000000e+00> : vector<32x128xf32>
    %13 = tpu.matmul %11, %12, %cst_10 {dimension_numbers = #tpu.dot_dimension_numbers<[1], [0], [0], [1], [0, 0, 1, 1], [], []>} : vector<32x128xf32>, vector<128x128xf32>, vector<32x128xf32> -> vector<32x128xf32>
    %c0_11 = arith.constant 0 : index
    %c0_12 = arith.constant 0 : index
    %14 = vector.load %arg6[%c0_11, %c0_12] : memref<1x128xf32, #tpu.memory_space<vmem>>, vector<1x128xf32>
    %15 = vector.broadcast %14 : vector<1x128xf32> to vector<32x128xf32>
    %16 = arith.addf %13, %15 : vector<32x128xf32>
    %cst_13 = arith.constant 0.000000e+00 : f32
    %17 = vector.broadcast %cst_13 : f32 to vector<32x128xf32>
    %18 = arith.maximumf %16, %17 : vector<32x128xf32>
    %c0_14 = arith.constant 0 : index
    %c0_15 = arith.constant 0 : index
    %19 = vector.load %arg7[%c0_14, %c0_15] : memref<128x256xf32, #tpu.memory_space<vmem>>, vector<128x256xf32>
    %cst_16 = arith.constant dense<0.000000e+00> : vector<32x256xf32>
    %20 = tpu.matmul %18, %19, %cst_16 {dimension_numbers = #tpu.dot_dimension_numbers<[1], [0], [0], [1], [0, 0, 1, 1], [], []>} : vector<32x128xf32>, vector<128x256xf32>, vector<32x256xf32> -> vector<32x256xf32>
    %c0_17 = arith.constant 0 : index
    %c0_18 = arith.constant 0 : index
    %21 = vector.load %arg8[%c0_17, %c0_18] : memref<1x256xf32, #tpu.memory_space<vmem>>, vector<1x256xf32>
    %22 = vector.broadcast %21 : vector<1x256xf32> to vector<32x256xf32>
    %23 = arith.addf %20, %22 : vector<32x256xf32>
    %cst_19 = arith.constant 0.000000e+00 : f32
    %24 = vector.broadcast %cst_19 : f32 to vector<32x256xf32>
    %25 = arith.maximumf %23, %24 : vector<32x256xf32>
    %c0_20 = arith.constant 0 : index
    %c0_21 = arith.constant 0 : index
    %26 = vector.load %arg12[%c0_20, %c0_21] : memref<1x256xf32, #tpu.memory_space<vmem>>, vector<1x256xf32>
    %cst_22 = arith.constant dense<0.000000e+00> : vector<256xf32>
    %27 = vector.multi_reduction <add>, %25, %cst_22 [0] : vector<32x256xf32> to vector<256xf32>
    %28 = vector.shape_cast %27 : vector<256xf32> to vector<1x256xf32>
    %29 = arith.addf %26, %28 : vector<1x256xf32>
    %c0_23 = arith.constant 0 : index
    %c0_24 = arith.constant 0 : index
    %30 = vector.load %arg12[%c0_23, %c0_24] : memref<1x256xf32, #tpu.memory_space<vmem>>, vector<1x256xf32>
    tpu.vector_store %arg12[%c0_23, %c0_24], %29 {strides = array<i32>} : memref<1x256xf32, #tpu.memory_space<vmem>>, vector<1x256xf32>,
    %c0_i32_25 = arith.constant 0 : i32
    %31 = arith.cmpi eq, %arg1, %c0_i32_25 : i32
    %32 = arith.extui %31 : i1 to i32
    %c0_i32_26 = arith.constant 0 : i32
    %33 = arith.cmpi ne, %32, %c0_i32_26 : i32
    scf.if %33 {
      %c0_27 = arith.constant 0 : index
      %c0_28 = arith.constant 0 : index
      %34 = vector.load %arg12[%c0_27, %c0_28] : memref<1x256xf32, #tpu.memory_space<vmem>>, vector<1x256xf32>
      %cst_29 = arith.constant 3.125000e-02 : f32
      %35 = vector.broadcast %cst_29 : f32 to vector<1x256xf32>
      %36 = arith.mulf %34, %35 : vector<1x256xf32>
      %c0_30 = arith.constant 0 : index
      %c0_31 = arith.constant 0 : index
      %37 = vector.load %arg9[%c0_30, %c0_31] : memref<256x128xf32, #tpu.memory_space<vmem>>, vector<256x128xf32>
      %cst_32 = arith.constant dense<0.000000e+00> : vector<1x128xf32>
      %38 = tpu.matmul %36, %37, %cst_32 {dimension_numbers = #tpu.dot_dimension_numbers<[1], [0], [0], [1], [0, 0, 1, 1], [], []>} : vector<1x256xf32>, vector<256x128xf32>, vector<1x128xf32> -> vector<1x128xf32>
      %c0_33 = arith.constant 0 : index
      %c0_34 = arith.constant 0 : index
      %39 = vector.load %arg10[%c0_33, %c0_34] : memref<1x128xf32, #tpu.memory_space<vmem>>, vector<1x128xf32>
      %40 = arith.addf %38, %39 : vector<1x128xf32>
      %c0_35 = arith.constant 0 : index
      %c0_36 = arith.constant 0 : index
      %c0_37 = arith.constant 0 : index
      %41 = vector.load %arg11[%c0_35, %c0_36, %c0_37] : memref<1x1x128xf32, #tpu.memory_space<vmem>>, vector<1x1x128xf32>
      %42 = vector.shape_cast %41 : vector<1x1x128xf32> to vector<1x128xf32>
      %43 = vector.shape_cast %40 : vector<1x128xf32> to vector<1x1x128xf32>
      tpu.vector_store %arg11[%c0_35, %c0_36, %c0_37], %43 {strides = array<i32>} : memref<1x1x128xf32, #tpu.memory_space<vmem>>, vector<1x1x128xf32>,
    } else {
    }
    return
  }
  func.func @transform_0(%arg0: i32, %arg1: i32) -> (i32, i32, i32) {
    %c0_i32 = arith.constant 0 : i32
    %c0_i32_0 = arith.constant 0 : i32
    return %arg0, %arg1, %c0_i32 : i32, i32, i32
  }
  func.func @transform_1(%arg0: i32, %arg1: i32) -> (i32, i32) {
    %c0_i32 = arith.constant 0 : i32
    %c0_i32_0 = arith.constant 0 : i32
    %c0_i32_1 = arith.constant 0 : i32
    return %c0_i32, %c0_i32_0 : i32, i32
  }
  func.func @transform_2(%arg0: i32, %arg1: i32) -> (i32, i32) {
    %c0_i32 = arith.constant 0 : i32
    %c0_i32_0 = arith.constant 0 : i32
    %c0_i32_1 = arith.constant 0 : i32
    return %c0_i32, %c0_i32_0 : i32, i32
  }
  func.func @transform_3(%arg0: i32, %arg1: i32) -> (i32, i32) {
    %c0_i32 = arith.constant 0 : i32
    %c0_i32_0 = arith.constant 0 : i32
    %c0_i32_1 = arith.constant 0 : i32
    return %c0_i32, %c0_i32_0 : i32, i32
  }
  func.func @transform_4(%arg0: i32, %arg1: i32) -> (i32, i32) {
    %c0_i32 = arith.constant 0 : i32
    %c0_i32_0 = arith.constant 0 : i32
    %c0_i32_1 = arith.constant 0 : i32
    return %c0_i32, %c0_i32_0 : i32, i32
  }
  func.func @transform_5(%arg0: i32, %arg1: i32) -> (i32, i32) {
    %c0_i32 = arith.constant 0 : i32
    %c0_i32_0 = arith.constant 0 : i32
    %c0_i32_1 = arith.constant 0 : i32
    return %c0_i32, %c0_i32_0 : i32, i32
  }
  func.func @transform_6(%arg0: i32, %arg1: i32) -> (i32, i32) {
    %c0_i32 = arith.constant 0 : i32
    %c0_i32_0 = arith.constant 0 : i32
    %c0_i32_1 = arith.constant 0 : i32
    return %c0_i32, %c0_i32_0 : i32, i32
  }
  func.func @transform_7(%arg0: i32, %arg1: i32) -> (i32, i32) {
    %c0_i32 = arith.constant 0 : i32
    %c0_i32_0 = arith.constant 0 : i32
    %c0_i32_1 = arith.constant 0 : i32
    return %c0_i32, %c0_i32_0 : i32, i32
  }
  func.func @transform_8(%arg0: i32, %arg1: i32) -> (i32, i32) {
    %c0_i32 = arith.constant 0 : i32
    %c0_i32_0 = arith.constant 0 : i32
    %c0_i32_1 = arith.constant 0 : i32
    return %c0_i32, %c0_i32_0 : i32, i32
  }
  func.func @transform_9(%arg0: i32, %arg1: i32) -> (i32, i32, i32) {
    %c0_i32 = arith.constant 0 : i32
    %c0_i32_0 = arith.constant 0 : i32
    %c0_i32_1 = arith.constant 0 : i32
    return %arg0, %c0_i32, %c0_i32_0 : i32, i32, i32
  }
}

</mosaic_0001>

<llo_original>
// kernel: tpu_custom_call.1
$region0: #{tpu_custom_call.1}
  #allocation0 [shape = 'u32[]', space=smem, size = 0x4, offset = 0x4, fixed_abs, tag = 'smem constant byte address 0x4 - core index']
  #allocation1 [shape = 'u32[72,128]{1,0:T(1,128)}', space=vmem, size = 0x9000, scoped, tag = 'internal scratch']
  #allocation2 [shape = 'f32[1,256]{1,0:T(1,128)}', space=vmem, size = 0x400, scoped, tag = 'scratch operand']
  %s0 = inlined_call_operand.hbm [shape: f32[4,32,256], index: 0, kind: input, shape index: {}]
  %s1 = inlined_call_operand.hbm [shape: f32[256,128], index: 1, kind: input, shape index: {}]
  %s2 = inlined_call_operand.vmem [shape: f32[1,128], index: 2, kind: input, shape index: {}]
  %s3 = inlined_call_operand.hbm [shape: f32[128,128], index: 3, kind: input, shape index: {}]
  %s4 = inlined_call_operand.hbm [shape: f32[1,128], index: 4, kind: input, shape index: {}]
  %s5 = inlined_call_operand.hbm [shape: f32[128,256], index: 5, kind: input, shape index: {}]
  %s6 = inlined_call_operand.vmem [shape: f32[1,256], index: 6, kind: input, shape index: {}]
  %s7 = inlined_call_operand.hbm [shape: f32[256,128], index: 7, kind: input, shape index: {}]
  %s8 = inlined_call_operand.vmem [shape: f32[1,128], index: 8, kind: input, shape index: {}]
  %s9 = inlined_call_operand.hbm [shape: f32[4,1,128], index: 9, kind: output, shape index: {}]
  %s10 = sld [smem:[#allocation0]]
  $region101: #{tpu_custom_call.1} parent=0
    _
  %s12 = ssub.s32 1, %s10
  %s13 = scalar_select 0, %s12, %s10
  $region1: #{tpu_custom_call.1} parent=0
    #allocation3 [shape = 'u8[65536]{0}', space=vmem, size = 0x10000, scoped, tag = 'input window, operand 0']
    #allocation4 [shape = 's32[2]{0}', space=sflag, size = 0x8, scoped, tag = 'scoped memory for tpu_custom_call.1']
    #allocation5 [shape = 's32[2]{0}', space=sflag, size = 0x8, scoped, tag = 'scoped memory for tpu_custom_call.1']
    #allocation6 [shape = 'u8[131072]{0}', space=vmem, size = 0x20000, scoped, tag = 'input window, operand 1, single buffered']
    #allocation7 [shape = 's32[1]{0}', space=sflag, size = 0x4, scoped, tag = 'scoped memory for tpu_custom_call.1']
    #allocation8 [shape = 'u8[65536]{0}', space=vmem, size = 0x10000, scoped, tag = 'input window, operand 3, single buffered']
    #allocation9 [shape = 'u8[512]{0}', space=vmem, size = 0x400, scoped, tag = 'input window, operand 4, single buffered']
    #allocation10 [shape = 's32[1]{0}', space=sflag, size = 0x4, scoped, tag = 'scoped memory for tpu_custom_call.1']
    #allocation11 [shape = 'u8[131072]{0}', space=vmem, size = 0x20000, scoped, tag = 'input window, operand 5, single buffered']
    #allocation12 [shape = 'u8[131072]{0}', space=vmem, size = 0x20000, scoped, tag = 'input window, operand 7, single buffered']
    #allocation13 [shape = 's32[1]{0}', space=sflag, size = 0x4, scoped, tag = 'scoped memory for tpu_custom_call.1']
    #allocation14 [shape = 'u8[1024]{0}', space=vmem, size = 0x400, scoped, tag = 'output window, operand 0']
    %14 = vsyncpa [#allocation4], 0
    %s15 = scalar_lea.sflag [#allocation4], 1
    %16 = vsyncpa %s15, 0
    %17 = vsyncpa [#allocation7], 0
    %18 = vsyncpa [#allocation10], 0
    %19 = vsyncpa [#allocation13], 0
    %20 = vsyncpa [#allocation5], 0
    %s21 = scalar_lea.sflag [#allocation5], 1
    %22 = vsyncpa %s21, 0
    loop: start=0, step=1, limit=6
    $region2: #{tpu_custom_call.1} parent=1 // loop_pre_header
      _
    $region3: #{tpu_custom_call.1} parent=1 // loop_header
      %s24 = sphi 0, %s28
      %p25 = scmp.ge.s32.totalorder %s24, 6
      %s31 = sphi 0, %s43
      %s32 = sphi 0, %s39
      %s33 = sphi 0, %s31
      %s34 = sphi 0, %s32
      %s35 = sphi 0, %s33
      %s36 = sphi 0, %s34
      %s48 = sphi 0, %s50
      %s51 = sphi 0, %s48
      %s52 = sphi 0, %s51
      %s68 = sphi 0, %s52
      %s72 = sphi 0, %s72
      %s74 = sphi 0, %s72
      %s75 = sphi 0, %s74
      %s89 = sphi 0, %s75
      %s93 = sphi 0, %s93
      %s95 = sphi 0, %s93
      %s96 = sphi 0, %s95
      %s110 = sphi 0, %s96
      %s114 = sphi 0, %s114
      %s116 = sphi 0, %s114
      %s117 = sphi 0, %s116
      %s131 = sphi 0, %s117
      %s135 = sphi 0, %s135
      %s137 = sphi 0, %s135
      %s138 = sphi 0, %s137
      %s152 = sphi 0, %s138
      %s156 = sphi 0, %s156
      %s158 = sphi 0, %s156
      %s159 = sphi 0, %s158
      %s173 = sphi 0, %s159
      %s177 = sphi 0, %s177
      %s179 = sphi 0, %s177
      %s180 = sphi 0, %s179
      %s194 = sphi 0, %s180
      %s198 = sphi 0, %s198
      %s200 = sphi 0, %s198
      %s201 = sphi 0, %s200
      %s215 = sphi 0, %s201
      %s219 = sphi 0, %s219
      %s221 = sphi 0, %s219
      %s222 = sphi 0, %s221
      %s236 = sphi 0, %s222
      %s242 = sphi 0, %s244
      %s245 = sphi 0, %s242
      %s246 = sphi 0, %s245
      %s262 = sphi 0, %s246
    $region4: #{tpu_custom_call.1} parent=1 // loop_header_branch
      %27 = sbr.rel (%p25) target = $region8
    $region5: #{tpu_custom_call.1} parent=1 // loop_body
      %s29 = ssub.s32 %s24, 1
      %s30 = ssub.s32 %s24, 2
      %s37 = sadd.s32 1, %s32
      %p38 = scmp.ge.s32.totalorder %s37, 1
      %s39 = scalar_select %p38, 0, %s37
      %s40 = sadd.s32 1, %s31
      %s41 = scalar_select %p38, %s40, %s31
      %p42 = scmp.ge.s32.totalorder %s41, 4
      %s43 = scalar_select %p42, 0, %s41
      %s44 = ssub.s32 %s31, %s43
      %s45 = ssub.s32 %s32, %s39
      %s46 = sor.u32 %s44, %s45
      %p47 = scmp.eq.s32.totalorder %s46, 0
      %s49 = sadd.s32 %s48, 1
      %s50 = scalar_select %p47, %s48, %s49
      %p53 = pneg %p47
      %p54 = scmp.eq.s32.totalorder %s24, 3
      %p55 = por %p53, %p54
      %p56 = scmp.ne.s32.totalorder %s48, %s51
      %p57 = scmp.eq.s32.totalorder %s24, 0
      %p58 = por %p56, %p57
      %p59 = scmp.ne.s32.totalorder %s48, %s51
      %p60 = scmp.eq.s32.totalorder %s29, 3
      %p61 = por %p59, %p60
      %p62 = scmp.ne.s32.totalorder %s51, %s52
      %p63 = scmp.eq.s32.totalorder %s29, 0
      %p64 = por %p62, %p63
      %p65 = scmp.ne.s32.totalorder %s51, %s52
      %p66 = scmp.eq.s32.totalorder %s30, 3
      %p67 = por %p65, %p66
      %p69 = scmp.ne.s32.totalorder %s52, %s68
      %p70 = scmp.eq.s32.totalorder %s30, 0
      %p71 = por %p69, %p70
      %s73 = sadd.s32 %s72, 1
      %p76 = scmp.eq.s32.totalorder %s24, 3
      %p77 = scmp.ne.s32.totalorder %s72, %s74
      %p78 = scmp.eq.s32.totalorder %s24, 0
      %p79 = por %p77, %p78
      %p80 = scmp.ne.s32.totalorder %s72, %s74
      %p81 = scmp.eq.s32.totalorder %s29, 3
      %p82 = por %p80, %p81
      %p83 = scmp.ne.s32.totalorder %s74, %s75
      %p84 = scmp.eq.s32.totalorder %s29, 0
      %p85 = por %p83, %p84
      %p86 = scmp.ne.s32.totalorder %s74, %s75
      %p87 = scmp.eq.s32.totalorder %s30, 3
      %p88 = por %p86, %p87
      %p90 = scmp.ne.s32.totalorder %s75, %s89
      %p91 = scmp.eq.s32.totalorder %s30, 0
      %p92 = por %p90, %p91
      %s94 = sadd.s32 %s93, 1
      %p97 = scmp.eq.s32.totalorder %s24, 3
      %p98 = scmp.ne.s32.totalorder %s93, %s95
      %p99 = scmp.eq.s32.totalorder %s24, 0
      %p100 = por %p98, %p99
      %p101 = scmp.ne.s32.totalorder %s93, %s95
      %p102 = scmp.eq.s32.totalorder %s29, 3
      %p103 = por %p101, %p102
      %p104 = scmp.ne.s32.totalorder %s95, %s96
      %p105 = scmp.eq.s32.totalorder %s29, 0
      %p106 = por %p104, %p105
      %p107 = scmp.ne.s32.totalorder %s95, %s96
      %p108 = scmp.eq.s32.totalorder %s30, 3
      %p109 = por %p107, %p108
      %p111 = scmp.ne.s32.totalorder %s96, %s110
      %p112 = scmp.eq.s32.totalorder %s30, 0
      %p113 = por %p111, %p112
      %s115 = sadd.s32 %s114, 1
      %p118 = scmp.eq.s32.totalorder %s24, 3
      %p119 = scmp.ne.s32.totalorder %s114, %s116
      %p120 = scmp.eq.s32.totalorder %s24, 0
      %p121 = por %p119, %p120
      %p122 = scmp.ne.s32.totalorder %s114, %s116
      %p123 = scmp.eq.s32.totalorder %s29, 3
      %p124 = por %p122, %p123
      %p125 = scmp.ne.s32.totalorder %s116, %s117
      %p126 = scmp.eq.s32.totalorder %s29, 0
      %p127 = por %p125, %p126
      %p128 = scmp.ne.s32.totalorder %s116, %s117
      %p129 = scmp.eq.s32.totalorder %s30, 3
      %p130 = por %p128, %p129
      %p132 = scmp.ne.s32.totalorder %s117, %s131
      %p133 = scmp.eq.s32.totalorder %s30, 0
      %p134 = por %p132, %p133
      %s136 = sadd.s32 %s135, 1
      %p139 = scmp.eq.s32.totalorder %s24, 3
      %p140 = scmp.ne.s32.totalorder %s135, %s137
      %p141 = scmp.eq.s32.totalorder %s24, 0
      %p142 = por %p140, %p141
      %p143 = scmp.ne.s32.totalorder %s135, %s137
      %p144 = scmp.eq.s32.totalorder %s29, 3
      %p145 = por %p143, %p144
      %p146 = scmp.ne.s32.totalorder %s137, %s138
      %p147 = scmp.eq.s32.totalorder %s29, 0
      %p148 = por %p146, %p147
      %p149 = scmp.ne.s32.totalorder %s137, %s138
      %p150 = scmp.eq.s32.totalorder %s30, 3
      %p151 = por %p149, %p150
      %p153 = scmp.ne.s32.totalorder %s138, %s152
      %p154 = scmp.eq.s32.totalorder %s30, 0
      %p155 = por %p153, %p154
      %s157 = sadd.s32 %s156, 1
      %p160 = scmp.eq.s32.totalorder %s24, 3
      %p161 = scmp.ne.s32.totalorder %s156, %s158
      %p162 = scmp.eq.s32.totalorder %s24, 0
      %p163 = por %p161, %p162
      %p164 = scmp.ne.s32.totalorder %s156, %s158
      %p165 = scmp.eq.s32.totalorder %s29, 3
      %p166 = por %p164, %p165
      %p167 = scmp.ne.s32.totalorder %s158, %s159
      %p168 = scmp.eq.s32.totalorder %s29, 0
      %p169 = por %p167, %p168
      %p170 = scmp.ne.s32.totalorder %s158, %s159
      %p171 = scmp.eq.s32.totalorder %s30, 3
      %p172 = por %p170, %p171
      %p174 = scmp.ne.s32.totalorder %s159, %s173
      %p175 = scmp.eq.s32.totalorder %s30, 0
      %p176 = por %p174, %p175
      %s178 = sadd.s32 %s177, 1
      %p181 = scmp.eq.s32.totalorder %s24, 3
      %p182 = scmp.ne.s32.totalorder %s177, %s179
      %p183 = scmp.eq.s32.totalorder %s24, 0
      %p184 = por %p182, %p183
      %p185 = scmp.ne.s32.totalorder %s177, %s179
      %p186 = scmp.eq.s32.totalorder %s29, 3
      %p187 = por %p185, %p186
      %p188 = scmp.ne.s32.totalorder %s179, %s180
      %p189 = scmp.eq.s32.totalorder %s29, 0
      %p190 = por %p188, %p189
      %p191 = scmp.ne.s32.totalorder %s179, %s180
      %p192 = scmp.eq.s32.totalorder %s30, 3
      %p193 = por %p191, %p192
      %p195 = scmp.ne.s32.totalorder %s180, %s194
      %p196 = scmp.eq.s32.totalorder %s30, 0
      %p197 = por %p195, %p196
      %s199 = sadd.s32 %s198, 1
      %p202 = scmp.eq.s32.totalorder %s24, 3
      %p203 = scmp.ne.s32.totalorder %s198, %s200
      %p204 = scmp.eq.s32.totalorder %s24, 0
      %p205 = por %p203, %p204
      %p206 = scmp.ne.s32.totalorder %s198, %s200
      %p207 = scmp.eq.s32.totalorder %s29, 3
      %p208 = por %p206, %p207
      %p209 = scmp.ne.s32.totalorder %s200, %s201
      %p210 = scmp.eq.s32.totalorder %s29, 0
      %p211 = por %p209, %p210
      %p212 = scmp.ne.s32.totalorder %s200, %s201
      %p213 = scmp.eq.s32.totalorder %s30, 3
      %p214 = por %p212, %p213
      %p216 = scmp.ne.s32.totalorder %s201, %s215
      %p217 = scmp.eq.s32.totalorder %s30, 0
      %p218 = por %p216, %p217
      %s220 = sadd.s32 %s219, 1
      %p223 = scmp.eq.s32.totalorder %s24, 3
      %p224 = scmp.ne.s32.totalorder %s219, %s221
      %p225 = scmp.eq.s32.totalorder %s24, 0
      %p226 = por %p224, %p225
      %p227 = scmp.ne.s32.totalorder %s219, %s221
      %p228 = scmp.eq.s32.totalorder %s29, 3
      %p229 = por %p227, %p228
      %p230 = scmp.ne.s32.totalorder %s221, %s222
      %p231 = scmp.eq.s32.totalorder %s29, 0
      %p232 = por %p230, %p231
      %p233 = scmp.ne.s32.totalorder %s221, %s222
      %p234 = scmp.eq.s32.totalorder %s30, 3
      %p235 = por %p233, %p234
      %p237 = scmp.ne.s32.totalorder %s222, %s236
      %p238 = scmp.eq.s32.totalorder %s30, 0
      %p239 = por %p237, %p238
      %s240 = ssub.s32 %s31, %s43
      %p241 = scmp.eq.s32.totalorder %s240, 0
      %s243 = sadd.s32 %s242, 1
      %s244 = scalar_select %p241, %s242, %s243
      %p247 = pneg %p241
      %p248 = scmp.eq.s32.totalorder %s24, 3
      %p249 = por %p247, %p248
      %p250 = scmp.ne.s32.totalorder %s242, %s245
      %p251 = scmp.eq.s32.totalorder %s24, 0
      %p252 = por %p250, %p251
      %p253 = scmp.ne.s32.totalorder %s242, %s245
      %p254 = scmp.eq.s32.totalorder %s29, 3
      %p255 = por %p253, %p254
      %p256 = scmp.ne.s32.totalorder %s245, %s246
      %p257 = scmp.eq.s32.totalorder %s29, 0
      %p258 = por %p256, %p257
      %p259 = scmp.ne.s32.totalorder %s245, %s246
      %p260 = scmp.eq.s32.totalorder %s30, 3
      %p261 = por %p259, %p260
      %p263 = scmp.ne.s32.totalorder %s246, %s262
      %p264 = scmp.eq.s32.totalorder %s30, 0
      %p265 = por %p263, %p264
      %p266 = scmp.le.s32.totalorder 1, %s24
      %p267 = scmp.lt.s32.totalorder %s24, 5
      %p268 = pnand %p266, %p267
      %p269 = pneg %p268
      // Predicated region
      $region9: #{tpu_custom_call.1} parent=5 // pred_check
        _
      $region10: #{tpu_custom_call.1} parent=5 // pred_check_branch
        %271 = sbr.rel (%p268) target = $region12
      $region11: #{tpu_custom_call.1} parent=5 // pred_region
        %s272 = ssub.s32 %s24, 1
        // Predicated region
        $region13: #{tpu_custom_call.1} parent=11 // pred_check
          %p273 = pneg %p85
        $region14: #{tpu_custom_call.1} parent=11 // pred_check_branch
          %275 = sbr.rel (%p273) target = $region16
        $region15: #{tpu_custom_call.1} parent=11 // pred_region
          %277 = vsyncadd [#allocation7], 0
          %s278 = sshll.u32 %s1, 4
          %s279 = int_to_ptr.hbm [resolvable:$true] %s278
          %s280 = sshll.u32 [#allocation6], 4
          %s281 = int_to_ptr.vmem [resolvable:$true] %s280
          %286 = dma.hbm_to_vmem [thread:$0]  %s279, 4096, %s281, [#allocation7], 128, 128, 8
        $region16: #{tpu_custom_call.1} parent=11 // pred_fallthru
          _
        // Predicated region
        $region17: #{tpu_custom_call.1} parent=11 // pred_check
          %p287 = pneg %p106
        $region18: #{tpu_custom_call.1} parent=11 // pred_check_branch
          %289 = sbr.rel (%p287) target = $region20
        $region19: #{tpu_custom_call.1} parent=11 // pred_region
          _
        $region20: #{tpu_custom_call.1} parent=11 // pred_fallthru
          _
        // Predicated region
        $region21: #{tpu_custom_call.1} parent=11 // pred_check
          %p290 = pneg %p127
        $region22: #{tpu_custom_call.1} parent=11 // pred_check_branch
          %292 = sbr.rel (%p290) target = $region24
        $region23: #{tpu_custom_call.1} parent=11 // pred_region
          %294 = vsyncadd [#allocation7], 0
          %s295 = sshll.u32 %s3, 4
          %s296 = int_to_ptr.hbm [resolvable:$true] %s295
          %s297 = sshll.u32 [#allocation8], 4
          %s298 = int_to_ptr.vmem [resolvable:$true] %s297
          %303 = dma.hbm_to_vmem [thread:$0]  %s296, 2048, %s298, [#allocation7], 128, 128, 8
        $region24: #{tpu_custom_call.1} parent=11 // pred_fallthru
          _
        // Predicated region
        $region25: #{tpu_custom_call.1} parent=11 // pred_check
          %p304 = pneg %p148
        $region26: #{tpu_custom_call.1} parent=11 // pred_check_branch
          %306 = sbr.rel (%p304) target = $region28
        $region27: #{tpu_custom_call.1} parent=11 // pred_region
          %308 = vsyncadd [#allocation10], 0
          %s310 = sshll.u32 %s4, 4
          %s311 = int_to_ptr.hbm [resolvable:$true] %s310
          %s312 = sshll.u32 [#allocation9], 4
          %s313 = int_to_ptr.vmem [resolvable:$true] %s312
          %315 = dma.hbm_to_vmem [thread:$0]  %s311, 16, %s313, [#allocation10]
        $region28: #{tpu_custom_call.1} parent=11 // pred_fallthru
          _
        // Predicated region
        $region29: #{tpu_custom_call.1} parent=11 // pred_check
          %p316 = pneg %p169
        $region30: #{tpu_custom_call.1} parent=11 // pred_check_branch
          %318 = sbr.rel (%p316) target = $region32
        $region31: #{tpu_custom_call.1} parent=11 // pred_region
          %320 = vsyncadd [#allocation10], 0
          %s321 = sshll.u32 %s5, 4
          %s322 = int_to_ptr.hbm [resolvable:$true] %s321
          %s323 = sshll.u32 [#allocation11], 4
          %s324 = int_to_ptr.vmem [resolvable:$true] %s323
          %329 = dma.hbm_to_vmem [thread:$0]  %s322, 4096, %s324, [#allocation10], 256, 256, 16
        $region32: #{tpu_custom_call.1} parent=11 // pred_fallthru
          _
        // Predicated region
        $region33: #{tpu_custom_call.1} parent=11 // pred_check
          %p330 = pneg %p190
        $region34: #{tpu_custom_call.1} parent=11 // pred_check_branch
          %332 = sbr.rel (%p330) target = $region36
        $region35: #{tpu_custom_call.1} parent=11 // pred_region
          _
        $region36: #{tpu_custom_call.1} parent=11 // pred_fallthru
          _
        // Predicated region
        $region37: #{tpu_custom_call.1} parent=11 // pred_check
          %p333 = pneg %p211
        $region38: #{tpu_custom_call.1} parent=11 // pred_check_branch
          %335 = sbr.rel (%p333) target = $region40
        $region39: #{tpu_custom_call.1} parent=11 // pred_region
          %337 = vsyncadd [#allocation13], 0
          %s338 = sshll.u32 %s7, 4
          %s339 = int_to_ptr.hbm [resolvable:$true] %s338
          %s340 = sshll.u32 [#allocation12], 4
          %s341 = int_to_ptr.vmem [resolvable:$true] %s340
          %346 = dma.hbm_to_vmem [thread:$0]  %s339, 4096, %s341, [#allocation13], 128, 128, 8
        $region40: #{tpu_custom_call.1} parent=11 // pred_fallthru
          _
        // Predicated region
        $region41: #{tpu_custom_call.1} parent=11 // pred_check
          %p347 = pneg %p232
        $region42: #{tpu_custom_call.1} parent=11 // pred_check_branch
          %349 = sbr.rel (%p347) target = $region44
        $region43: #{tpu_custom_call.1} parent=11 // pred_region
          _
        $region44: #{tpu_custom_call.1} parent=11 // pred_fallthru
          _
      $region12: #{tpu_custom_call.1} parent=5 // pred_fallthru
        _
      %p350 = scmp.lt.s32.totalorder %s24, 4
      // Predicated region
      $region45: #{tpu_custom_call.1} parent=5 // pred_check
        %p351 = pneg %p350
      $region46: #{tpu_custom_call.1} parent=5 // pred_check_branch
        %353 = sbr.rel (%p351) target = $region48
      $region47: #{tpu_custom_call.1} parent=5 // pred_region
        // Predicated region
        $region49: #{tpu_custom_call.1} parent=47 // pred_check
          %p354 = pneg %p58
        $region50: #{tpu_custom_call.1} parent=47 // pred_check_branch
          %356 = sbr.rel (%p354) target = $region52
        $region51: #{tpu_custom_call.1} parent=47 // pred_region
          %s357 = sand.u32 %s48, 1
          %s358 = scalar_lea.sflag [#allocation4], %s357
          %s359 = sand.u32 %s48, 1
          %s360 = smul.addr %s359, 64
          %s361 = scalar_lea.vmem [#allocation3], %s360
          %s362 = smul.u32 4, %s32
          %364 = vsyncadd %s358, 0
          %s365 = smul.addr %s362, 2
          %s366 = smul.addr %s31, 8
          %s367 = sadd.s32 %s365, %s366
          %s368 = smul.addr %s367, 8
          %s369 = scalar_lea.hbm %s0, %s368
          %s370 = sshll.u32 %s369, 4
          %s371 = int_to_ptr.hbm [resolvable:$true] %s370
          %s372 = sshll.u32 %s361, 4
          %s373 = int_to_ptr.vmem [resolvable:$true] %s372
          %378 = dma.hbm_to_vmem [thread:$0]  %s371, 1024, %s373, %s358, 256, 256, 16
        $region52: #{tpu_custom_call.1} parent=47 // pred_fallthru
          _
      $region48: #{tpu_custom_call.1} parent=5 // pred_fallthru
        _
      %p379 = scmp.le.s32.totalorder 1, %s24
      %p380 = scmp.lt.s32.totalorder %s24, 5
      %p381 = pnand %p379, %p380
      %p382 = pneg %p381
      // Predicated region
      $region53: #{tpu_custom_call.1} parent=5 // pred_check
        _
      $region54: #{tpu_custom_call.1} parent=5 // pred_check_branch
        %384 = sbr.rel (%p381) target = $region56
      $region55: #{tpu_custom_call.1} parent=5 // pred_region
        %s385 = ssub.s32 %s24, 1
        %s386 = sand.u32 %s51, 1
        %s387 = scalar_lea.sflag [#allocation4], %s386
        %s388 = sand.u32 %s51, 1
        %s389 = smul.addr %s388, 64
        %s390 = scalar_lea.vmem [#allocation3], %s389
        // Predicated region
        $region57: #{tpu_custom_call.1} parent=55 // pred_check
          %p391 = pneg %p64
        $region58: #{tpu_custom_call.1} parent=55 // pred_check_branch
          %393 = sbr.rel (%p391) target = $region60
        $region59: #{tpu_custom_call.1} parent=55 // pred_region
          %395 = dma.done %s387, 1024
        $region60: #{tpu_custom_call.1} parent=55 // pred_fallthru
          _
        // Predicated region
        $region61: #{tpu_custom_call.1} parent=55 // pred_check
          %p396 = pneg %p85
        $region62: #{tpu_custom_call.1} parent=55 // pred_check_branch
          %398 = sbr.rel (%p396) target = $region64
        $region63: #{tpu_custom_call.1} parent=55 // pred_region
          %400 = dma.done [#allocation7], 4096
        $region64: #{tpu_custom_call.1} parent=55 // pred_fallthru
          _
        // Predicated region
        $region65: #{tpu_custom_call.1} parent=55 // pred_check
          %p401 = pneg %p127
        $region66: #{tpu_custom_call.1} parent=55 // pred_check_branch
          %403 = sbr.rel (%p401) target = $region68
        $region67: #{tpu_custom_call.1} parent=55 // pred_region
          %405 = dma.done [#allocation7], 2048
        $region68: #{tpu_custom_call.1} parent=55 // pred_fallthru
          _
        // Predicated region
        $region69: #{tpu_custom_call.1} parent=55 // pred_check
          %p406 = pneg %p148
        $region70: #{tpu_custom_call.1} parent=55 // pred_check_branch
          %408 = sbr.rel (%p406) target = $region72
        $region71: #{tpu_custom_call.1} parent=55 // pred_region
          %410 = dma.done [#allocation10], 16
        $region72: #{tpu_custom_call.1} parent=55 // pred_fallthru
          _
        // Predicated region
        $region73: #{tpu_custom_call.1} parent=55 // pred_check
          %p411 = pneg %p169
        $region74: #{tpu_custom_call.1} parent=55 // pred_check_branch
          %413 = sbr.rel (%p411) target = $region76
        $region75: #{tpu_custom_call.1} parent=55 // pred_region
          %415 = dma.done [#allocation10], 4096
        $region76: #{tpu_custom_call.1} parent=55 // pred_fallthru
          _
        // Predicated region
        $region77: #{tpu_custom_call.1} parent=55 // pred_check
          %p416 = pneg %p211
        $region78: #{tpu_custom_call.1} parent=55 // pred_check_branch
          %418 = sbr.rel (%p416) target = $region80
        $region79: #{tpu_custom_call.1} parent=55 // pred_region
          %420 = dma.done [#allocation13], 4096
        $region80: #{tpu_custom_call.1} parent=55 // pred_fallthru
          _
        %s421 = sand.u32 %s51, 1
        %s422 = scalar_lea.sflag [#allocation4], %s421
        %s423 = sand.u32 %s51, 1
        %s424 = smul.addr %s423, 64
        %s425 = scalar_lea.vmem [#allocation3], %s424
        %p426 = pneg %p64
        %p427 = pneg %p61
        %p428 = pneg %p85
        %p429 = pneg %p82
        %p430 = pneg %p106
        %p431 = pneg %p103
        %p432 = pneg %p127
        %p433 = pneg %p124
        %p434 = pneg %p148
        %p435 = pneg %p145
        %p436 = pneg %p169
        %p437 = pneg %p166
        %p438 = pneg %p190
        %p439 = pneg %p187
        %p440 = pneg %p211
        %p441 = pneg %p208
        %p442 = pneg %p232
        %p443 = pneg %p229
        %p444 = pneg %p258
        %p445 = pneg %p255
        %s446 = sand.u32 %s245, 1
        %s447 = scalar_lea.sflag [#allocation5], %s446
        %s448 = sand.u32 %s245, 1
        %s449 = scalar_lea.vmem [#allocation14], %s448
        %s450 = smul.u32 4, %s34
        %p451 = scmp.eq.s32.totalorder %s34, 0
        // Predicated region
        $region81: #{tpu_custom_call.1} parent=55 // pred_check
          %p452 = pneg %p451
        $region82: #{tpu_custom_call.1} parent=55 // pred_check_branch
          %454 = sbr.rel (%p452) target = $region84
        $region83: #{tpu_custom_call.1} parent=55 // pred_region
          %v455 = vlaneseq
          %vm456 = vcmp.ge.s32.totalorder %v455, 0
          %vm457 = vcmp.lt.s32.totalorder %v455, 256
          %vm458 = vmand %vm456, %vm457
          %459 = vst.msk [vmem:[#allocation2] sm:$0x3] %vm458, 0.0
        $region84: #{tpu_custom_call.1} parent=55 // pred_fallthru
          _
        %v460 = vld [vmem:[%s390] sm:$0xff]
        %v461 = vld [vmem:[%s390 + $0x8] sm:$0xff]
        %v462 = vld [vmem:[%s390 + $0x10] sm:$0xff]
        %v463 = vld [vmem:[%s390 + $0x18] sm:$0xff]
        %v464 = vld [vmem:[%s390 + $0x20] sm:$0xff]
        %v465 = vld [vmem:[%s390 + $0x28] sm:$0xff]
        %v466 = vld [vmem:[%s390 + $0x30] sm:$0xff]
        %v467 = vld [vmem:[%s390 + $0x38] sm:$0xff]
        %v468 = vld [vmem:[#allocation6] sm:$0xff]
        %v469 = vld [vmem:[#allocation6 + $0x8] sm:$0xff]
        %v470 = vld [vmem:[#allocation6 + $0x10] sm:$0xff]
        %v471 = vld [vmem:[#allocation6 + $0x18] sm:$0xff]
        %v472 = vld [vmem:[#allocation6 + $0x20] sm:$0xff]
        %v473 = vld [vmem:[#allocation6 + $0x28] sm:$0xff]
        %v474 = vld [vmem:[#allocation6 + $0x30] sm:$0xff]
        %v475 = vld [vmem:[#allocation6 + $0x38] sm:$0xff]
        %v476 = vld [vmem:[#allocation6 + $0x40] sm:$0xff]
        %v477 = vld [vmem:[#allocation6 + $0x48] sm:$0xff]
        %v478 = vld [vmem:[#allocation6 + $0x50] sm:$0xff]
        %v479 = vld [vmem:[#allocation6 + $0x58] sm:$0xff]
        %v480 = vld [vmem:[#allocation6 + $0x60] sm:$0xff]
        %v481 = vld [vmem:[#allocation6 + $0x68] sm:$0xff]
        %v482 = vld [vmem:[#allocation6 + $0x70] sm:$0xff]
        %v483 = vld [vmem:[#allocation6 + $0x78] sm:$0xff]
        %v484 = vld [vmem:[#allocation6 + $0x80] sm:$0xff]
        %v485 = vld [vmem:[#allocation6 + $0x88] sm:$0xff]
        %v486 = vld [vmem:[#allocation6 + $0x90] sm:$0xff]
        %v487 = vld [vmem:[#allocation6 + $0x98] sm:$0xff]
        %v488 = vld [vmem:[#allocation6 + $0xa0] sm:$0xff]
        %v489 = vld [vmem:[#allocation6 + $0xa8] sm:$0xff]
        %v490 = vld [vmem:[#allocation6 + $0xb0] sm:$0xff]
        %v491 = vld [vmem:[#allocation6 + $0xb8] sm:$0xff]
        %v492 = vld [vmem:[#allocation6 + $0xc0] sm:$0xff]
        %v493 = vld [vmem:[#allocation6 + $0xc8] sm:$0xff]
        %v494 = vld [vmem:[#allocation6 + $0xd0] sm:$0xff]
        %v495 = vld [vmem:[#allocation6 + $0xd8] sm:$0xff]
        %v496 = vld [vmem:[#allocation6 + $0xe0] sm:$0xff]
        %v497 = vld [vmem:[#allocation6 + $0xe8] sm:$0xff]
        %v498 = vld [vmem:[#allocation6 + $0xf0] sm:$0xff]
        %v499 = vld [vmem:[#allocation6 + $0xf8] sm:$0xff]
        %v500 = vld [vmem:[%s2] sm:$0x1]
        %v502 = vperm.slane %v500, 0
        %504 = vmatpush.msra.mxu0 %v483
        %505 = vmatpush.msra.mxu0 %v482
        %506 = vmatpush.msra.mxu0 %v481
        %507 = vmatpush.msra.mxu0 %v480
        %508 = vmatpush.msra.mxu0 %v479
        %509 = vmatpush.msra.mxu0 %v478
        %510 = vmatpush.msra.mxu0 %v477
        %511 = vmatpush.msra.mxu0 %v476
        %512 = vmatpush.msra.mxu0 %v475
        %513 = vmatpush.msra.mxu0 %v474
        %514 = vmatpush.msra.mxu0 %v473
        %515 = vmatpush.msra.mxu0 %v472
        %516 = vmatpush.msra.mxu0 %v471
        %517 = vmatpush.msra.mxu0 %v470
        %518 = vmatpush.msra.mxu0 %v469
        %519 = vmatpush.msra.mxu0 %v468
        %520 = vmatmul.f32.gmra.mxu0 %v460
        %v521 = vpop.f32.mrf.mxu0
        %v522 = vadd.f32 %v502, %v521
        %523 = vmatmul.f32.gmra.mxu0 %v462
        %v524 = vpop.f32.mrf.mxu0
        %v525 = vadd.f32 %v502, %v524
        %526 = vmatmul.f32.gmra.mxu0 %v464
        %v527 = vpop.f32.mrf.mxu0
        %v528 = vadd.f32 %v502, %v527
        %529 = vmatmul.f32.gmra.mxu0 %v466
        %v530 = vpop.f32.mrf.mxu0
        %v531 = vadd.f32 %v502, %v530
        %532 = vdwg.mxu0
        %533 = vmatpush.msra.mxu0 %v499
        %534 = vmatpush.msra.mxu0 %v498
        %535 = vmatpush.msra.mxu0 %v497
        %536 = vmatpush.msra.mxu0 %v496
        %537 = vmatpush.msra.mxu0 %v495
        %538 = vmatpush.msra.mxu0 %v494
        %539 = vmatpush.msra.mxu0 %v493
        %540 = vmatpush.msra.mxu0 %v492
        %541 = vmatpush.msra.mxu0 %v491
        %542 = vmatpush.msra.mxu0 %v490
        %543 = vmatpush.msra.mxu0 %v489
        %544 = vmatpush.msra.mxu0 %v488
        %545 = vmatpush.msra.mxu0 %v487
        %546 = vmatpush.msra.mxu0 %v486
        %547 = vmatpush.msra.mxu0 %v485
        %548 = vmatpush.msra.mxu0 %v484
        %549 = vmatmul.f32.gmra.mxu0 %v461
        %v550 = vpop.f32.mrf.mxu0
        %v551 = vadd.f32 %v522, %v550
        %552 = vmatmul.f32.gmra.mxu0 %v463
        %v553 = vpop.f32.mrf.mxu0
        %v554 = vadd.f32 %v525, %v553
        %555 = vmatmul.f32.gmra.mxu0 %v465
        %v556 = vpop.f32.mrf.mxu0
        %v557 = vadd.f32 %v528, %v556
        %558 = vmatmul.f32.gmra.mxu0 %v467
        %v559 = vpop.f32.mrf.mxu0
        %v560 = vadd.f32 %v531, %v559
        %561 = vdwg.mxu0
        %v562 = vmax.f32 %v551, 0.0
        %v563 = vmax.f32 %v554, 0.0
        %v564 = vmax.f32 %v557, 0.0
        %v565 = vmax.f32 %v560, 0.0
        %v566 = vld [vmem:[#allocation8] sm:$0xff]
        %v567 = vld [vmem:[#allocation8 + $0x8] sm:$0xff]
        %v568 = vld [vmem:[#allocation8 + $0x10] sm:$0xff]
        %v569 = vld [vmem:[#allocation8 + $0x18] sm:$0xff]
        %v570 = vld [vmem:[#allocation8 + $0x20] sm:$0xff]
        %v571 = vld [vmem:[#allocation8 + $0x28] sm:$0xff]
        %v572 = vld [vmem:[#allocation8 + $0x30] sm:$0xff]
        %v573 = vld [vmem:[#allocation8 + $0x38] sm:$0xff]
        %v574 = vld [vmem:[#allocation8 + $0x40] sm:$0xff]
        %v575 = vld [vmem:[#allocation8 + $0x48] sm:$0xff]
        %v576 = vld [vmem:[#allocation8 + $0x50] sm:$0xff]
        %v577 = vld [vmem:[#allocation8 + $0x58] sm:$0xff]
        %v578 = vld [vmem:[#allocation8 + $0x60] sm:$0xff]
        %v579 = vld [vmem:[#allocation8 + $0x68] sm:$0xff]
        %v580 = vld [vmem:[#allocation8 + $0x70] sm:$0xff]
        %v581 = vld [vmem:[#allocation8 + $0x78] sm:$0xff]
        %v582 = vld [vmem:[#allocation9] sm:$0x1]
        %v584 = vperm.slane %v582, 0
        %586 = vmatpush.msra.mxu0 %v581
        %587 = vmatpush.msra.mxu0 %v580
        %588 = vmatpush.msra.mxu0 %v579
        %589 = vmatpush.msra.mxu0 %v578
        %590 = vmatpush.msra.mxu0 %v577
        %591 = vmatpush.msra.mxu0 %v576
        %592 = vmatpush.msra.mxu0 %v575
        %593 = vmatpush.msra.mxu0 %v574
        %594 = vmatpush.msra.mxu0 %v573
        %595 = vmatpush.msra.mxu0 %v572
        %596 = vmatpush.msra.mxu0 %v571
        %597 = vmatpush.msra.mxu0 %v570
        %598 = vmatpush.msra.mxu0 %v569
        %599 = vmatpush.msra.mxu0 %v568
        %600 = vmatpush.msra.mxu0 %v567
        %601 = vmatpush.msra.mxu0 %v566
        %602 = vmatmul.f32.gmra.mxu0 %v562
        %v603 = vpop.f32.mrf.mxu0
        %v604 = vadd.f32 %v584, %v603
        %605 = vmatmul.f32.gmra.mxu0 %v563
        %v606 = vpop.f32.mrf.mxu0
        %v607 = vadd.f32 %v584, %v606
        %608 = vmatmul.f32.gmra.mxu0 %v564
        %v609 = vpop.f32.mrf.mxu0
        %v610 = vadd.f32 %v584, %v609
        %611 = vmatmul.f32.gmra.mxu0 %v565
        %v612 = vpop.f32.mrf.mxu0
        %v613 = vadd.f32 %v584, %v612
        %614 = vdwg.mxu0
        %v615 = vmax.f32 %v604, 0.0
        %v616 = vmax.f32 %v607, 0.0
        %v617 = vmax.f32 %v610, 0.0
        %v618 = vmax.f32 %v613, 0.0
        %v619 = vld [vmem:[#allocation11] sm:$0xff]
        %v620 = vld [vmem:[#allocation11 + $0x8] sm:$0xff]
        %v621 = vld [vmem:[#allocation11 + $0x10] sm:$0xff]
        %v622 = vld [vmem:[#allocation11 + $0x18] sm:$0xff]
        %v623 = vld [vmem:[#allocation11 + $0x20] sm:$0xff]
        %v624 = vld [vmem:[#allocation11 + $0x28] sm:$0xff]
        %v625 = vld [vmem:[#allocation11 + $0x30] sm:$0xff]
        %v626 = vld [vmem:[#allocation11 + $0x38] sm:$0xff]
        %v627 = vld [vmem:[#allocation11 + $0x40] sm:$0xff]
        %v628 = vld [vmem:[#allocation11 + $0x48] sm:$0xff]
        %v629 = vld [vmem:[#allocation11 + $0x50] sm:$0xff]
        %v630 = vld [vmem:[#allocation11 + $0x58] sm:$0xff]
        %v631 = vld [vmem:[#allocation11 + $0x60] sm:$0xff]
        %v632 = vld [vmem:[#allocation11 + $0x68] sm:$0xff]
        %v633 = vld [vmem:[#allocation11 + $0x70] sm:$0xff]
        %v634 = vld [vmem:[#allocation11 + $0x78] sm:$0xff]
        %v635 = vld [vmem:[#allocation11 + $0x80] sm:$0xff]
        %v636 = vld [vmem:[#allocation11 + $0x88] sm:$0xff]
        %v637 = vld [vmem:[#allocation11 + $0x90] sm:$0xff]
        %v638 = vld [vmem:[#allocation11 + $0x98] sm:$0xff]
        %v639 = vld [vmem:[#allocation11 + $0xa0] sm:$0xff]
        %v640 = vld [vmem:[#allocation11 + $0xa8] sm:$0xff]
        %v641 = vld [vmem:[#allocation11 + $0xb0] sm:$0xff]
        %v642 = vld [vmem:[#allocation11 + $0xb8] sm:$0xff]
        %v643 = vld [vmem:[#allocation11 + $0xc0] sm:$0xff]
        %v644 = vld [vmem:[#allocation11 + $0xc8] sm:$0xff]
        %v645 = vld [vmem:[#allocation11 + $0xd0] sm:$0xff]
        %v646 = vld [vmem:[#allocation11 + $0xd8] sm:$0xff]
        %v647 = vld [vmem:[#allocation11 + $0xe0] sm:$0xff]
        %v648 = vld [vmem:[#allocation11 + $0xe8] sm:$0xff]
        %v649 = vld [vmem:[#allocation11 + $0xf0] sm:$0xff]
        %v650 = vld [vmem:[#allocation11 + $0xf8] sm:$0xff]
        %v651 = vld [vmem:[%s6] sm:$0x3]
        %v653 = vperm.slane %v651, 0
        %v654 = vperm.slane %v651, 1
        %657 = vmatpush.msra.mxu0 %v649
        %658 = vmatpush.msra.mxu0 %v647
        %659 = vmatpush.msra.mxu0 %v645
        %660 = vmatpush.msra.mxu0 %v643
        %661 = vmatpush.msra.mxu0 %v641
        %662 = vmatpush.msra.mxu0 %v639
        %663 = vmatpush.msra.mxu0 %v637
        %664 = vmatpush.msra.mxu0 %v635
        %665 = vmatpush.msra.mxu0 %v633
        %666 = vmatpush.msra.mxu0 %v631
        %667 = vmatpush.msra.mxu0 %v629
        %668 = vmatpush.msra.mxu0 %v627
        %669 = vmatpush.msra.mxu0 %v625
        %670 = vmatpush.msra.mxu0 %v623
        %671 = vmatpush.msra.mxu0 %v621
        %672 = vmatpush.msra.mxu0 %v619
        %673 = vmatmul.f32.gmra.mxu0 %v615
        %v674 = vpop.f32.mrf.mxu0
        %v675 = vadd.f32 %v653, %v674
        %676 = vmatmul.f32.gmra.mxu0 %v616
        %v677 = vpop.f32.mrf.mxu0
        %v678 = vadd.f32 %v653, %v677
        %679 = vmatmul.f32.gmra.mxu0 %v617
        %v680 = vpop.f32.mrf.mxu0
        %v681 = vadd.f32 %v653, %v680
        %682 = vmatmul.f32.gmra.mxu0 %v618
        %v683 = vpop.f32.mrf.mxu0
        %v684 = vadd.f32 %v653, %v683
        %685 = vdwg.mxu0
        %686 = vmatpush.msra.mxu0 %v650
        %687 = vmatpush.msra.mxu0 %v648
        %688 = vmatpush.msra.mxu0 %v646
        %689 = vmatpush.msra.mxu0 %v644
        %690 = vmatpush.msra.mxu0 %v642
        %691 = vmatpush.msra.mxu0 %v640
        %692 = vmatpush.msra.mxu0 %v638
        %693 = vmatpush.msra.mxu0 %v636
        %694 = vmatpush.msra.mxu0 %v634
        %695 = vmatpush.msra.mxu0 %v632
        %696 = vmatpush.msra.mxu0 %v630
        %697 = vmatpush.msra.mxu0 %v628
        %698 = vmatpush.msra.mxu0 %v626
        %699 = vmatpush.msra.mxu0 %v624
        %700 = vmatpush.msra.mxu0 %v622
        %701 = vmatpush.msra.mxu0 %v620
        %702 = vmatmul.f32.gmra.mxu0 %v615
        %v703 = vpop.f32.mrf.mxu0
        %v704 = vadd.f32 %v654, %v703
        %705 = vmatmul.f32.gmra.mxu0 %v616
        %v706 = vpop.f32.mrf.mxu0
        %v707 = vadd.f32 %v654, %v706
        %708 = vmatmul.f32.gmra.mxu0 %v617
        %v709 = vpop.f32.mrf.mxu0
        %v710 = vadd.f32 %v654, %v709
        %711 = vmatmul.f32.gmra.mxu0 %v618
        %v712 = vpop.f32.mrf.mxu0
        %v713 = vadd.f32 %v654, %v712
        %714 = vdwg.mxu0
        %v715 = vmax.f32 %v675, 0.0
        %v716 = vmax.f32 %v704, 0.0
        %v717 = vmax.f32 %v678, 0.0
        %v718 = vmax.f32 %v707, 0.0
        %v719 = vmax.f32 %v681, 0.0
        %v720 = vmax.f32 %v710, 0.0
        %v721 = vmax.f32 %v684, 0.0
        %v722 = vmax.f32 %v713, 0.0
        %v723 = vld [vmem:[#allocation2] sm:$0x3]
        %v724 = vadd.f32 %v715, %v717
        %v725 = vadd.f32 %v724, %v719
        %v726 = vadd.f32 %v725, %v721
        %v727 = vrot.slane %v726, 4
        %v728 = vadd.f32 %v726, %v727
        %v729 = vrot.slane %v728, 2
        %v730 = vadd.f32 %v728, %v729
        %v731 = vrot.slane %v730, 1
        %v732 = vadd.f32 %v730, %v731
        %v733 = vadd.f32 %v716, %v718
        %v734 = vadd.f32 %v733, %v720
        %v735 = vadd.f32 %v734, %v722
        %v736 = vrot.slane %v735, 4
        %v737 = vadd.f32 %v735, %v736
        %v738 = vrot.slane %v737, 2
        %v739 = vadd.f32 %v737, %v738
        %v740 = vrot.slane %v739, 1
        %v741 = vadd.f32 %v739, %v740
        %v744 = vrot.slane %v741, 7
        %vm745 = vcmask 1040384
        %v746 = vsel %vm745, %v732, %v744
        %v748 = vadd.f32 %v723, %v746
        %v749 = vlaneseq
        %vm750 = vcmp.ge.s32.totalorder %v749, 0
        %vm751 = vcmp.lt.s32.totalorder %v749, 256
        %vm752 = vmand %vm750, %vm751
        %753 = vst.msk [vmem:[#allocation2] sm:$0x3] %vm752, %v748
        // Predicated region
        $region85: #{tpu_custom_call.1} parent=55 // pred_check
          %p754 = pneg %p451
        $region86: #{tpu_custom_call.1} parent=55 // pred_check_branch
          %756 = sbr.rel (%p754) target = $region88
        $region87: #{tpu_custom_call.1} parent=55 // pred_region
          %v757 = vld [vmem:[#allocation2] sm:$0x3]
          %v758 = vmul.f32 %v757, 0.03125
          %v759 = vld [vmem:[#allocation12] sm:$0xff]
          %v760 = vld [vmem:[#allocation12 + $0x8] sm:$0xff]
          %v761 = vld [vmem:[#allocation12 + $0x10] sm:$0xff]
          %v762 = vld [vmem:[#allocation12 + $0x18] sm:$0xff]
          %v763 = vld [vmem:[#allocation12 + $0x20] sm:$0xff]
          %v764 = vld [vmem:[#allocation12 + $0x28] sm:$0xff]
          %v765 = vld [vmem:[#allocation12 + $0x30] sm:$0xff]
          %v766 = vld [vmem:[#allocation12 + $0x38] sm:$0xff]
          %v767 = vld [vmem:[#allocation12 + $0x40] sm:$0xff]
          %v768 = vld [vmem:[#allocation12 + $0x48] sm:$0xff]
          %v769 = vld [vmem:[#allocation12 + $0x50] sm:$0xff]
          %v770 = vld [vmem:[#allocation12 + $0x58] sm:$0xff]
          %v771 = vld [vmem:[#allocation12 + $0x60] sm:$0xff]
          %v772 = vld [vmem:[#allocation12 + $0x68] sm:$0xff]
          %v773 = vld [vmem:[#allocation12 + $0x70] sm:$0xff]
          %v774 = vld [vmem:[#allocation12 + $0x78] sm:$0xff]
          %v775 = vld [vmem:[#allocation12 + $0x80] sm:$0xff]
          %v776 = vld [vmem:[#allocation12 + $0x88] sm:$0xff]
          %v777 = vld [vmem:[#allocation12 + $0x90] sm:$0xff]
          %v778 = vld [vmem:[#allocation12 + $0x98] sm:$0xff]
          %v779 = vld [vmem:[#allocation12 + $0xa0] sm:$0xff]
          %v780 = vld [vmem:[#allocation12 + $0xa8] sm:$0xff]
          %v781 = vld [vmem:[#allocation12 + $0xb0] sm:$0xff]
          %v782 = vld [vmem:[#allocation12 + $0xb8] sm:$0xff]
          %v783 = vld [vmem:[#allocation12 + $0xc0] sm:$0xff]
          %v784 = vld [vmem:[#allocation12 + $0xc8] sm:$0xff]
          %v785 = vld [vmem:[#allocation12 + $0xd0] sm:$0xff]
          %v786 = vld [vmem:[#allocation12 + $0xd8] sm:$0xff]
          %v787 = vld [vmem:[#allocation12 + $0xe0] sm:$0xff]
          %v788 = vld [vmem:[#allocation12 + $0xe8] sm:$0xff]
          %v789 = vld [vmem:[#allocation12 + $0xf0] sm:$0xff]
          %v790 = vld [vmem:[#allocation12 + $0xf8] sm:$0xff]
          %v791 = vld [vmem:[%s8] sm:$0x1]
          %v793 = vperm.slane %v758, 0
          %v794 = vperm.slane %v758, 1
          %797 = vmatpush.msra.mxu0 %v774
          %798 = vmatpush.msra.mxu0 %v773
          %799 = vmatpush.msra.mxu0 %v772
          %800 = vmatpush.msra.mxu0 %v771
          %801 = vmatpush.msra.mxu0 %v770
          %802 = vmatpush.msra.mxu0 %v769
          %803 = vmatpush.msra.mxu0 %v768
          %804 = vmatpush.msra.mxu0 %v767
          %805 = vmatpush.msra.mxu0 %v766
          %806 = vmatpush.msra.mxu0 %v765
          %807 = vmatpush.msra.mxu0 %v764
          %808 = vmatpush.msra.mxu0 %v763
          %809 = vmatpush.msra.mxu0 %v762
          %810 = vmatpush.msra.mxu0 %v761
          %811 = vmatpush.msra.mxu0 %v760
          %812 = vmatpush.msra.mxu0 %v759
          %813 = vmatmul.f32.gmra.mxu0 %v793
          %v814 = vpop.f32.mrf.mxu0
          %v815 = vadd.f32 %v791, %v814
          %816 = vdwg.mxu0
          %817 = vmatpush.msra.mxu0 %v790
          %818 = vmatpush.msra.mxu0 %v789
          %819 = vmatpush.msra.mxu0 %v788
          %820 = vmatpush.msra.mxu0 %v787
          %821 = vmatpush.msra.mxu0 %v786
          %822 = vmatpush.msra.mxu0 %v785
          %823 = vmatpush.msra.mxu0 %v784
          %824 = vmatpush.msra.mxu0 %v783
          %825 = vmatpush.msra.mxu0 %v782
          %826 = vmatpush.msra.mxu0 %v781
          %827 = vmatpush.msra.mxu0 %v780
          %828 = vmatpush.msra.mxu0 %v779
          %829 = vmatpush.msra.mxu0 %v778
          %830 = vmatpush.msra.mxu0 %v777
          %831 = vmatpush.msra.mxu0 %v776
          %832 = vmatpush.msra.mxu0 %v775
          %833 = vmatmul.f32.gmra.mxu0 %v794
          %v834 = vpop.f32.mrf.mxu0
          %v835 = vadd.f32 %v815, %v834
          %836 = vdwg.mxu0
          %837 = vst [vmem:[%s449] sm:$0x1] %v835
        $region88: #{tpu_custom_call.1} parent=55 // pred_fallthru
          _
        %s838 = sand.u32 %s245, 1
        %s839 = scalar_lea.sflag [#allocation5], %s838
        %s840 = sand.u32 %s245, 1
        %s841 = scalar_lea.vmem [#allocation14], %s840
        // Predicated region
        $region89: #{tpu_custom_call.1} parent=55 // pred_check
          %p842 = pneg %p255
        $region90: #{tpu_custom_call.1} parent=55 // pred_check_branch
          %844 = sbr.rel (%p842) target = $region92
        $region91: #{tpu_custom_call.1} parent=55 // pred_region
          %846 = vsyncadd %s839, 0
          %s847 = scalar_lea.hbm %s9, %s33
          %s849 = sshll.u32 %s841, 4
          %s850 = int_to_ptr.vmem [resolvable:$true] %s849
          %s851 = sshll.u32 %s847, 4
          %s852 = int_to_ptr.hbm [resolvable:$true] %s851
          %854 = dma.vmem_to_hbm [thread:$0]  %s850, 16, %s852, %s839
        $region92: #{tpu_custom_call.1} parent=55 // pred_fallthru
          _
      $region56: #{tpu_custom_call.1} parent=5 // pred_fallthru
        _
      %p855 = scmp.le.s32.totalorder 2, %s24
      // Predicated region
      $region93: #{tpu_custom_call.1} parent=5 // pred_check
        %p856 = pneg %p855
      $region94: #{tpu_custom_call.1} parent=5 // pred_check_branch
        %858 = sbr.rel (%p856) target = $region96
      $region95: #{tpu_custom_call.1} parent=5 // pred_region
        %s859 = ssub.s32 %s24, 2
        // Predicated region
        $region97: #{tpu_custom_call.1} parent=95 // pred_check
          %p860 = pneg %p261
        $region98: #{tpu_custom_call.1} parent=95 // pred_check_branch
          %862 = sbr.rel (%p860) target = $region100
        $region99: #{tpu_custom_call.1} parent=95 // pred_region
          %s863 = sand.u32 %s246, 1
          %s864 = scalar_lea.sflag [#allocation5], %s863
          %s865 = sand.u32 %s246, 1
          %s866 = scalar_lea.vmem [#allocation14], %s865
          %868 = dma.done %s864, 16
        $region100: #{tpu_custom_call.1} parent=95 // pred_fallthru
          _
      $region96: #{tpu_custom_call.1} parent=5 // pred_fallthru
        _
    $region6: #{tpu_custom_call.1} parent=1 // loop_footer
      %s28 = sadd.s32 1, %s24
    $region7: #{tpu_custom_call.1} parent=1 // loop_footer_branch
      %23 = sbr.rel target = $region3
    $region8: #{tpu_custom_call.1} parent=1 // loop_exit
      _
    %869 = vsyncpa [#allocation4], 1
    %s870 = scalar_lea.sflag [#allocation4], 1
    %871 = vsyncpa %s870, 1
    %872 = vsyncpa [#allocation7], 1
    %873 = vsyncpa [#allocation10], 1
    %874 = vsyncpa [#allocation13], 1
    %875 = vsyncpa [#allocation5], 1
    %s876 = scalar_lea.sflag [#allocation5], 1
    %877 = vsyncpa %s876, 1

</llo_original>
